<compile_context>
chip_gen: v5e
topology: v5e:2x2
jax: 0.10.0
libtpu: 0.0.40
codegen_flags: <defaults>
</compile_context>

<pallas_src>
import functools

import jax
import jax.numpy as jnp
from jax.experimental import pallas as pl
from jax.experimental.pallas import tpu as pltpu

INPUT_SIZE = 11
HIDDEN_SIZE = 256
OUTPUT_SIZE = 4
PADDED_OUT_ROWS = 8        # fc3 output rows padded 4 -> 8 (one sublane tile)
LANE = 128                 # batch sits on the lane axis of the transposed output
DEFAULT_TILE_B = 2048      # big tiles: kernel is grid-step-overhead / HBM bound


def _round_up(n, m):
    return (n + m - 1) // m * m


def _linear_qnet_kernel(x_ref, w1_ref, b1_ref, w2_ref, b2_ref, w3t_ref, b3t_ref,
                        out_ref):
    # x tile: (TILE_B, 11) f32 streamed from HBM; cast to bf16 in-kernel (VALU
    # has slack here; avoids a wrapper-side cast that re-streams x through HBM).
    x = x_ref[...].astype(jnp.bfloat16)

    # fc1: bf16 MXU matmul, f32 accumulation; bias + ReLU on the f32 accumulator
    # (keep elementwise math in f32 — v5e has no bf16 VALU/EUP).
    h1 = jnp.dot(x, w1_ref[...], preferred_element_type=jnp.float32)
    h1 = jnp.maximum(h1 + b1_ref[...], 0.0).astype(jnp.bfloat16)

    # fc2 + ReLU
    h2 = jnp.dot(h1, w2_ref[...], preferred_element_type=jnp.float32)
    h2 = jnp.maximum(h2 + b2_ref[...], 0.0).astype(jnp.bfloat16)

    # fc3, emitted transposed: out = w3t @ h2^T -> (8, TILE_B).  Batch lands on
    # the lane axis so the store is lane-dense and the HBM writeback is 8 f32
    # per example instead of 128 (16x less output traffic).
    yt = jax.lax.dot_general(
        w3t_ref[...], h2,
        dimension_numbers=(((1,), (1,)), ((), ())),   # q @ k^T - style contraction
        preferred_element_type=jnp.float32)
    out_ref[...] = (yt + b3t_ref[...]).astype(out_ref.dtype)


def prepare_params(params):
    """One-time operand prep, hoisted out of the forward path.

    params: w_i shaped (in_features, out_features) (transposed vs. PyTorch
    nn.Linear.weight), b_i shaped (out_features,).
    Returns bf16 weights, fc3 pre-transposed + row-padded to 8, f32 biases."""
    w1 = params["w1"].astype(jnp.bfloat16)                      # (11, 256)
    w2 = params["w2"].astype(jnp.bfloat16)                      # (256, 256)
    w3t = jnp.zeros((PADDED_OUT_ROWS, HIDDEN_SIZE), jnp.float32)
    w3t = w3t.at[:OUTPUT_SIZE, :].set(params["w3"].T).astype(jnp.bfloat16)  # (8, 256)
    b1 = params["b1"].reshape(1, HIDDEN_SIZE).astype(jnp.float32)
    b2 = params["b2"].reshape(1, HIDDEN_SIZE).astype(jnp.float32)
    b3t = jnp.zeros((PADDED_OUT_ROWS, 1), jnp.float32)
    b3t = b3t.at[:OUTPUT_SIZE, 0].set(params["b3"].astype(jnp.float32))     # (8, 1)
    return {"w1": w1, "b1": b1, "w2": w2, "b2": b2, "w3t": w3t, "b3t": b3t}


@functools.partial(jax.jit, static_argnames=("tile_b",))
def linear_qnet_forward(x, prep, tile_b=DEFAULT_TILE_B):
    """x: (B, 11) float. prep: output of prepare_params. Returns (B, 4) f32,
    matching LinearQNet.forward (modulo bf16 weight/activation rounding)."""
    b = x.shape[0]
    x = x.astype(jnp.float32)   # no-op if already f32; cast to bf16 happens in-kernel

    # --- batch tiling ------------------------------------------------------
    # Batch sits on the lane axis of the transposed output, so tiles are
    # multiples of 128.  If the batch is big enough to feed both v7x
    # TensorCores, keep the "parallel" grid axis at >= 2 balanced blocks.
    b_aligned = _round_up(b, LANE)
    if b_aligned >= 2 * LANE:
        num_blocks = max(2, pl.cdiv(b_aligned, tile_b))
    else:
        num_blocks = 1
    tile_b = _round_up(pl.cdiv(b_aligned, num_blocks), LANE)
    b_pad = num_blocks * tile_b
    if b_pad != b:
        x = jnp.pad(x, ((0, b_pad - b), (0, 0)))   # only when not tile-aligned
    grid = (num_blocks,)

    flops = 2 * b_pad * (INPUT_SIZE * HIDDEN_SIZE
                         + HIDDEN_SIZE * HIDDEN_SIZE
                         + HIDDEN_SIZE * PADDED_OUT_ROWS)
    bytes_accessed = (b_pad * INPUT_SIZE * 4                    # x (f32)
                      + prep["w1"].size * 2 + prep["w2"].size * 2
                      + prep["w3t"].size * 2
                      + (prep["b1"].size + prep["b2"].size + prep["b3t"].size) * 4
                      + PADDED_OUT_ROWS * b_pad * 4)            # transposed out

    out = pl.pallas_call(
        _linear_qnet_kernel,
        out_shape=jax.ShapeDtypeStruct((PADDED_OUT_ROWS, b_pad), jnp.float32),
        grid=grid,
        in_specs=[
            # x tile streams along the batch grid axis (auto double-buffered).
            pl.BlockSpec((tile_b, INPUT_SIZE), lambda i: (i, 0)),
            # Weights / biases: constant index_map -> DMA'd once, VMEM-resident.
            # (Default double-buffering kept: pl.Buffered(1) would only save
            #  ~0.2 MiB and VMEM is nowhere near a constraint.)
            pl.BlockSpec((INPUT_SIZE, HIDDEN_SIZE), lambda i: (0, 0)),
            pl.BlockSpec((1, HIDDEN_SIZE), lambda i: (0, 0)),
            pl.BlockSpec((HIDDEN_SIZE, HIDDEN_SIZE), lambda i: (0, 0)),
            pl.BlockSpec((1, HIDDEN_SIZE), lambda i: (0, 0)),
            pl.BlockSpec((PADDED_OUT_ROWS, HIDDEN_SIZE), lambda i: (0, 0)),
            pl.BlockSpec((PADDED_OUT_ROWS, 1), lambda i: (0, 0)),
        ],
        # Transposed output: batch on the lane axis, lane-dense stores.
        out_specs=pl.BlockSpec((PADDED_OUT_ROWS, tile_b), lambda i: (0, i)),
        compiler_params=pltpu.CompilerParams(
            # Shard batch blocks across v7x's 2 TensorCores.
            dimension_semantics=("parallel",),
            # VMEM is not the constraint on any generation (~3-6 MiB even at
            # tile_b=2048); this is just generous headroom.
            vmem_limit_bytes=32 * 1024 * 1024,
        ),
        cost_estimate=pl.CostEstimate(
            flops=flops, bytes_accessed=bytes_accessed, transcendentals=0),
    )(x, prep["w1"], prep["b1"], prep["w2"], prep["b2"], prep["w3t"],
      prep["b3t"])

    # Drop the padded output rows / padded batch lanes, back to (B, 4).
    return out[:OUTPUT_SIZE, :b].T


def init_params(key):
    """Deterministic synthetic init (uniform, PyTorch-Linear-like bounds)."""
    ks = jax.random.split(key, 6)

    def linear(kw, kb, fan_in, fan_out):
        bound = 1.0 / jnp.sqrt(jnp.float32(fan_in))
        w = jax.random.uniform(kw, (fan_in, fan_out), jnp.float32, -bound, bound)
        b = jax.random.uniform(kb, (fan_out,), jnp.float32, -bound, bound)
        return w, b

    w1, b1 = linear(ks[0], ks[1], INPUT_SIZE, HIDDEN_SIZE)
    w2, b2 = linear(ks[2], ks[3], HIDDEN_SIZE, HIDDEN_SIZE)
    w3, b3 = linear(ks[4], ks[5], HIDDEN_SIZE, OUTPUT_SIZE)
    return {"w1": w1, "b1": b1, "w2": w2, "b2": b2, "w3": w3, "b3": b3}


def ref_forward(x, params):
    """Pure-JAX reference with the same bf16 weight/activation rounding as the
    kernel (f32 accumulation), matching the PyTorch forward math."""
    bf = lambda a: a.astype(jnp.bfloat16).astype(jnp.float32)
    h = jnp.maximum(bf(x) @ bf(params["w1"]) + params["b1"], 0.0)
    h = jnp.maximum(bf(h) @ bf(params["w2"]) + params["b2"], 0.0)
    return bf(h) @ bf(params["w3"]) + params["b3"]


if __name__ == "__main__":
    key = jax.random.PRNGKey(0)
    pkey, xkey = jax.random.split(key)

    params = init_params(pkey)
    prep = prepare_params(params)

    # Small deterministic input (single grid block path).
    batch = 8
    x = jax.random.normal(xkey, (batch, INPUT_SIZE), jnp.float32)
    out = linear_qnet_forward(x, prep)
    jax.block_until_ready(out)
    ref = ref_forward(x, params)
    assert out.shape == (batch, OUTPUT_SIZE)
    assert jnp.allclose(out, ref, atol=2e-3, rtol=2e-3), (
        "max abs err = %f" % float(jnp.max(jnp.abs(out - ref))))

    # Also exercise the multi-block path (>= 2 blocks, v7x TC sharding + batch
    # padding + balanced tiles).
    batch2 = 200
    x2 = jax.random.normal(jax.random.PRNGKey(1), (batch2, INPUT_SIZE),
                           jnp.float32)
    out2 = linear_qnet_forward(x2, prep)
    jax.block_until_ready(out2)
    ref2 = ref_forward(x2, params)
    assert out2.shape == (batch2, OUTPUT_SIZE)
    assert jnp.allclose(out2, ref2, atol=2e-3, rtol=2e-3), (
        "max abs err = %f" % float(jnp.max(jnp.abs(out2 - ref2))))

    print("KERNEL_OK")
</pallas_src>

<mosaic_0001>
module attributes {stable_mosaic.version = 11 : i64} {
  func.func @_linear_qnet_kernel(%arg0: i32, %arg1: memref<128x11xf32, #tpu.memory_space<vmem>>, %arg2: memref<11x256xbf16, #tpu.memory_space<vmem>>, %arg3: memref<1x256xf32, #tpu.memory_space<vmem>>, %arg4: memref<256x256xbf16, #tpu.memory_space<vmem>>, %arg5: memref<1x256xf32, #tpu.memory_space<vmem>>, %arg6: memref<8x256xbf16, #tpu.memory_space<vmem>>, %arg7: memref<8x1xf32, #tpu.memory_space<vmem>>, %arg8: memref<8x128xf32, #tpu.memory_space<vmem>>) attributes {dimension_semantics = [#tpu.dimension_semantics<parallel>], iteration_bounds = array<i64: 1>, scalar_prefetch = 0 : i64, scratch_operands = 0 : i64, tpu.core_type = #tpu.core_type<tc>, window_params = [{transform_indices = @transform_0, window_bounds = array<i64: 128, 11>}, {pipeline_mode = #tpu.pipeline_mode<synchronous>, transform_indices = @transform_1, window_bounds = array<i64: 11, 256>}, {pipeline_mode = #tpu.pipeline_mode<synchronous>, transform_indices = @transform_2, window_bounds = array<i64: 1, 256>}, {pipeline_mode = #tpu.pipeline_mode<synchronous>, transform_indices = @transform_3, window_bounds = array<i64: 256, 256>}, {pipeline_mode = #tpu.pipeline_mode<synchronous>, transform_indices = @transform_4, window_bounds = array<i64: 1, 256>}, {pipeline_mode = #tpu.pipeline_mode<synchronous>, transform_indices = @transform_5, window_bounds = array<i64: 8, 256>}, {pipeline_mode = #tpu.pipeline_mode<synchronous>, transform_indices = @transform_6, window_bounds = array<i64: 8, 1>}, {transform_indices = @transform_7, window_bounds = array<i64: 8, 128>}]} {
    %c0 = arith.constant 0 : index
    %c0_0 = arith.constant 0 : index
    %0 = vector.load %arg1[%c0, %c0_0] : memref<128x11xf32, #tpu.memory_space<vmem>>, vector<128x11xf32>
    %1 = arith.truncf %0 : vector<128x11xf32> to vector<128x11xbf16>
    %c0_1 = arith.constant 0 : index
    %c0_2 = arith.constant 0 : index
    %2 = vector.load %arg2[%c0_1, %c0_2] : memref<11x256xbf16, #tpu.memory_space<vmem>>, vector<11x256xbf16>
    %cst = arith.constant dense<0.000000e+00> : vector<128x256xf32>
    %3 = tpu.matmul %1, %2, %cst {dimension_numbers = #tpu.dot_dimension_numbers<[1], [0], [0], [1], [0, 0, 1, 1], [], []>} : vector<128x11xbf16>, vector<11x256xbf16>, vector<128x256xf32> -> vector<128x256xf32>
    %c0_3 = arith.constant 0 : index
    %c0_4 = arith.constant 0 : index
    %4 = vector.load %arg3[%c0_3, %c0_4] : memref<1x256xf32, #tpu.memory_space<vmem>>, vector<1x256xf32>
    %5 = vector.broadcast %4 : vector<1x256xf32> to vector<128x256xf32>
    %6 = arith.addf %3, %5 : vector<128x256xf32>
    %cst_5 = arith.constant 0.000000e+00 : f32
    %7 = vector.broadcast %cst_5 : f32 to vector<128x256xf32>
    %8 = arith.maximumf %6, %7 : vector<128x256xf32>
    %9 = arith.truncf %8 : vector<128x256xf32> to vector<128x256xbf16>
    %c0_6 = arith.constant 0 : index
    %c0_7 = arith.constant 0 : index
    %10 = vector.load %arg4[%c0_6, %c0_7] : memref<256x256xbf16, #tpu.memory_space<vmem>>, vector<256x256xbf16>
    %cst_8 = arith.constant dense<0.000000e+00> : vector<128x256xf32>
    %11 = tpu.matmul %9, %10, %cst_8 {dimension_numbers = #tpu.dot_dimension_numbers<[1], [0], [0], [1], [0, 0, 1, 1], [], []>} : vector<128x256xbf16>, vector<256x256xbf16>, vector<128x256xf32> -> vector<128x256xf32>
    %c0_9 = arith.constant 0 : index
    %c0_10 = arith.constant 0 : index
    %12 = vector.load %arg5[%c0_9, %c0_10] : memref<1x256xf32, #tpu.memory_space<vmem>>, vector<1x256xf32>
    %13 = vector.broadcast %12 : vector<1x256xf32> to vector<128x256xf32>
    %14 = arith.addf %11, %13 : vector<128x256xf32>
    %cst_11 = arith.constant 0.000000e+00 : f32
    %15 = vector.broadcast %cst_11 : f32 to vector<128x256xf32>
    %16 = arith.maximumf %14, %15 : vector<128x256xf32>
    %17 = arith.truncf %16 : vector<128x256xf32> to vector<128x256xbf16>
    %c0_12 = arith.constant 0 : index
    %c0_13 = arith.constant 0 : index
    %18 = vector.load %arg6[%c0_12, %c0_13] : memref<8x256xbf16, #tpu.memory_space<vmem>>, vector<8x256xbf16>
    %cst_14 = arith.constant dense<0.000000e+00> : vector<8x128xf32>
    %19 = tpu.matmul %18, %17, %cst_14 {dimension_numbers = #tpu.dot_dimension_numbers<[1], [1], [0], [0], [0, 0, 1, 0], [], []>} : vector<8x256xbf16>, vector<128x256xbf16>, vector<8x128xf32> -> vector<8x128xf32>
    %c0_15 = arith.constant 0 : index
    %c0_16 = arith.constant 0 : index
    %20 = vector.load %arg7[%c0_15, %c0_16] : memref<8x1xf32, #tpu.memory_space<vmem>>, vector<8x1xf32>
    %21 = vector.broadcast %20 : vector<8x1xf32> to vector<8x128xf32>
    %22 = arith.addf %19, %21 : vector<8x128xf32>
    %c0_17 = arith.constant 0 : index
    %c0_18 = arith.constant 0 : index
    %23 = vector.load %arg8[%c0_17, %c0_18] : memref<8x128xf32, #tpu.memory_space<vmem>>, vector<8x128xf32>
    tpu.vector_store %arg8[%c0_17, %c0_18], %22 {strides = array<i32>} : memref<8x128xf32, #tpu.memory_space<vmem>>, vector<8x128xf32>,
    return
  }
  func.func @transform_0(%arg0: i32) -> (i32, i32) {
    %c0_i32 = arith.constant 0 : i32
    %c0_i32_0 = arith.constant 0 : i32
    return %arg0, %c0_i32 : i32, i32
  }
  func.func @transform_1(%arg0: i32) -> (i32, i32) {
    %c0_i32 = arith.constant 0 : i32
    %c0_i32_0 = arith.constant 0 : i32
    %c0_i32_1 = arith.constant 0 : i32
    return %c0_i32, %c0_i32_0 : i32, i32
  }
  func.func @transform_2(%arg0: i32) -> (i32, i32) {
    %c0_i32 = arith.constant 0 : i32
    %c0_i32_0 = arith.constant 0 : i32
    %c0_i32_1 = arith.constant 0 : i32
    return %c0_i32, %c0_i32_0 : i32, i32
  }
  func.func @transform_3(%arg0: i32) -> (i32, i32) {
    %c0_i32 = arith.constant 0 : i32
    %c0_i32_0 = arith.constant 0 : i32
    %c0_i32_1 = arith.constant 0 : i32
    return %c0_i32, %c0_i32_0 : i32, i32
  }
  func.func @transform_4(%arg0: i32) -> (i32, i32) {
    %c0_i32 = arith.constant 0 : i32
    %c0_i32_0 = arith.constant 0 : i32
    %c0_i32_1 = arith.constant 0 : i32
    return %c0_i32, %c0_i32_0 : i32, i32
  }
  func.func @transform_5(%arg0: i32) -> (i32, i32) {
    %c0_i32 = arith.constant 0 : i32
    %c0_i32_0 = arith.constant 0 : i32
    %c0_i32_1 = arith.constant 0 : i32
    return %c0_i32, %c0_i32_0 : i32, i32
  }
  func.func @transform_6(%arg0: i32) -> (i32, i32) {
    %c0_i32 = arith.constant 0 : i32
    %c0_i32_0 = arith.constant 0 : i32
    %c0_i32_1 = arith.constant 0 : i32
    return %c0_i32, %c0_i32_0 : i32, i32
  }
  func.func @transform_7(%arg0: i32) -> (i32, i32) {
    %c0_i32 = arith.constant 0 : i32
    %c0_i32_0 = arith.constant 0 : i32
    return %c0_i32, %arg0 : i32, i32
  }
}

</mosaic_0001>

<llo_original>
// kernel: linear_qnet_forward.1
$region0: #{linear_qnet_forward.1}
  #allocation0 [shape = 'u32[]', space=smem, size = 0x4, offset = 0x4, fixed_abs, tag = 'smem constant byte address 0x4 - core index']
  #allocation1 [shape = 'u32[72,128]{1,0:T(1,128)}', space=vmem, size = 0x9000, scoped, tag = 'internal scratch']
  %s0 = inlined_call_operand.vmem [shape: f32[128,11], index: 0, kind: input, shape index: {}]
  %s1 = inlined_call_operand.vmem [shape: bf16[11,256], index: 1, kind: input, shape index: {}]
  %s2 = inlined_call_operand.vmem [shape: f32[1,256], index: 2, kind: input, shape index: {}]
  %s3 = inlined_call_operand.hbm [shape: bf16[256,256], index: 3, kind: input, shape index: {}]
  %s4 = inlined_call_operand.vmem [shape: f32[1,256], index: 4, kind: input, shape index: {}]
  %s5 = inlined_call_operand.vmem [shape: bf16[8,256], index: 5, kind: input, shape index: {}]
  %s6 = inlined_call_operand.vmem [shape: f32[8,1], index: 6, kind: input, shape index: {}]
  %s7 = inlined_call_operand.vmem [shape: f32[8,128], index: 7, kind: output, shape index: {}]
  %s8 = sld [smem:[#allocation0]]
  $region42: #{linear_qnet_forward.1} parent=0
    _
  %s10 = ssub.s32 1, %s8
  %s11 = scalar_select 0, %s10, %s8
  $region1: #{linear_qnet_forward.1} parent=0
    #allocation2 [shape = 'u8[131072]{0}', space=vmem, size = 0x20000, scoped, tag = 'input window, operand 3, single buffered']
    #allocation3 [shape = 's32[1]{0}', space=sflag, size = 0x4, scoped, tag = 'scoped memory for linear_qnet_forward.1']
    %12 = vsyncpa [#allocation3], 0
    // Predicated region
    $region2: #{linear_qnet_forward.1} parent=1 // pred_check
      _
    $region3: #{linear_qnet_forward.1} parent=1 // pred_check_branch
      %14 = sbr.rel (0) target = $region5
    $region4: #{linear_qnet_forward.1} parent=1 // pred_region
      _
    $region5: #{linear_qnet_forward.1} parent=1 // pred_fallthru
      _
    // Predicated region
    $region6: #{linear_qnet_forward.1} parent=1 // pred_check
      _
    $region7: #{linear_qnet_forward.1} parent=1 // pred_check_branch
      %16 = sbr.rel (0) target = $region9
    $region8: #{linear_qnet_forward.1} parent=1 // pred_region
      _
    $region9: #{linear_qnet_forward.1} parent=1 // pred_fallthru
      _
    // Predicated region
    $region10: #{linear_qnet_forward.1} parent=1 // pred_check
      _
    $region11: #{linear_qnet_forward.1} parent=1 // pred_check_branch
      %18 = sbr.rel (0) target = $region13
    $region12: #{linear_qnet_forward.1} parent=1 // pred_region
      _
    $region13: #{linear_qnet_forward.1} parent=1 // pred_fallthru
      _
    // Predicated region
    $region14: #{linear_qnet_forward.1} parent=1 // pred_check
      _
    $region15: #{linear_qnet_forward.1} parent=1 // pred_check_branch
      %20 = sbr.rel (0) target = $region17
    $region16: #{linear_qnet_forward.1} parent=1 // pred_region
      %22 = vsyncadd [#allocation3], 0
      %s23 = sshll.u32 %s3, 4
      %s24 = int_to_ptr.hbm [resolvable:$true] %s23
      %s25 = sshll.u32 [#allocation2], 4
      %s26 = int_to_ptr.vmem [resolvable:$true] %s25
      %31 = dma.hbm_to_vmem [thread:$0]  %s24, 4096, %s26, [#allocation3], 128, 128, 8
    $region17: #{linear_qnet_forward.1} parent=1 // pred_fallthru
      _
    // Predicated region
    $region18: #{linear_qnet_forward.1} parent=1 // pred_check
      _
    $region19: #{linear_qnet_forward.1} parent=1 // pred_check_branch
      %33 = sbr.rel (0) target = $region21
    $region20: #{linear_qnet_forward.1} parent=1 // pred_region
      _
    $region21: #{linear_qnet_forward.1} parent=1 // pred_fallthru
      _
    // Predicated region
    $region22: #{linear_qnet_forward.1} parent=1 // pred_check
      _
    $region23: #{linear_qnet_forward.1} parent=1 // pred_check_branch
      %35 = sbr.rel (0) target = $region25
    $region24: #{linear_qnet_forward.1} parent=1 // pred_region
      _
    $region25: #{linear_qnet_forward.1} parent=1 // pred_fallthru
      _
    // Predicated region
    $region26: #{linear_qnet_forward.1} parent=1 // pred_check
      _
    $region27: #{linear_qnet_forward.1} parent=1 // pred_check_branch
      %37 = sbr.rel (0) target = $region29
    $region28: #{linear_qnet_forward.1} parent=1 // pred_region
      _
    $region29: #{linear_qnet_forward.1} parent=1 // pred_fallthru
      _
    // Predicated region
    $region30: #{linear_qnet_forward.1} parent=1 // pred_check
      _
    $region31: #{linear_qnet_forward.1} parent=1 // pred_check_branch
      %39 = sbr.rel (0) target = $region33
    $region32: #{linear_qnet_forward.1} parent=1 // pred_region
      %41 = dma.done [#allocation3], 4096
    $region33: #{linear_qnet_forward.1} parent=1 // pred_fallthru
      _
    %v43 = vld [vmem:[%s0] sm:$0xff]
    %v44 = vld [vmem:[%s0 + $0x8] sm:$0xff]
    %v45 = vld [vmem:[%s0 + $0x10] sm:$0xff]
    %v46 = vld [vmem:[%s0 + $0x18] sm:$0xff]
    %v47 = vld [vmem:[%s0 + $0x20] sm:$0xff]
    %v48 = vld [vmem:[%s0 + $0x28] sm:$0xff]
    %v49 = vld [vmem:[%s0 + $0x30] sm:$0xff]
    %v50 = vld [vmem:[%s0 + $0x38] sm:$0xff]
    %v51 = vld [vmem:[%s0 + $0x40] sm:$0xff]
    %v52 = vld [vmem:[%s0 + $0x48] sm:$0xff]
    %v53 = vld [vmem:[%s0 + $0x50] sm:$0xff]
    %v54 = vld [vmem:[%s0 + $0x58] sm:$0xff]
    %v55 = vld [vmem:[%s0 + $0x60] sm:$0xff]
    %v56 = vld [vmem:[%s0 + $0x68] sm:$0xff]
    %v57 = vld [vmem:[%s0 + $0x70] sm:$0xff]
    %v58 = vld [vmem:[%s0 + $0x78] sm:$0xff]
    %v59 = vpack.c.bf16 %v44, %v43
    %v60 = vpack.c.bf16 %v46, %v45
    %v61 = vpack.c.bf16 %v48, %v47
    %v62 = vpack.c.bf16 %v50, %v49
    %v63 = vpack.c.bf16 %v52, %v51
    %v64 = vpack.c.bf16 %v54, %v53
    %v65 = vpack.c.bf16 %v56, %v55
    %v66 = vpack.c.bf16 %v58, %v57
    %v67 = vld [vmem:[%s1] sm:$0xff]
    %v68 = vld [vmem:[%s1 + $0x8] sm:$0x33]
    %v69 = vld [vmem:[%s2] sm:$0x3]
    %v71 = vperm.slane %v69, 0
    %v72 = vperm.slane %v69, 1
    %v77 = vunpack.c.l.b16 %v67
    %v78 = vunpack.c.h.b16 %v67
    %v79 = vunpack.c.l.b16 %v68
    %v80 = vunpack.c.h.b16 %v68
    %v81 = vpack.c.b16 %v79, %v77
    %v82 = vpack.c.b16 %v80, %v78
    %vm83 = vcmask 89088
    %v85 = vsel %vm83, %v59, 0
    %v88 = vsel %vm83, %v60, 0
    %v91 = vsel %vm83, %v61, 0
    %v94 = vsel %vm83, %v62, 0
    %v97 = vsel %vm83, %v63, 0
    %v100 = vsel %vm83, %v64, 0
    %v103 = vsel %vm83, %v65, 0
    %v106 = vsel %vm83, %v66, 0
    %vm108 = vcmask 1044480
    %vm109 = vcmask 1045504
    %v110 = vsel %vm108, 4294967295, 65535
    %v111 = vsel %vm109, %v110, 0
    %v113 = vand.u32 %v81, %v111
    %v116 = vand.u32 %v82, %v111
    %118 = vmatpush.bf16.msra.mxu0 0
    %119 = vmatpush.bf16.msra.mxu0 0
    %120 = vmatpush.bf16.msra.mxu0 0
    %121 = vmatpush.bf16.msra.mxu0 0
    %122 = vmatpush.bf16.msra.mxu0 0
    %123 = vmatpush.bf16.msra.mxu0 0
    %124 = vmatpush.bf16.msra.mxu0 0
    %125 = vmatpush.bf16.msra.mxu0 %v113
    %126 = vmatmul.bf16.gmra.mxu0 %v85
    %v127 = vpop.f32.mrf.mxu0
    %v128 = vadd.f32 %v71, %v127
    %v129 = vpop.f32.mrf.mxu0
    %v130 = vadd.f32 %v71, %v129
    %131 = vmatmul.bf16.gmra.mxu0 %v88
    %v132 = vpop.f32.mrf.mxu0
    %v133 = vadd.f32 %v71, %v132
    %v134 = vpop.f32.mrf.mxu0
    %v135 = vadd.f32 %v71, %v134
    %136 = vmatmul.bf16.gmra.mxu0 %v91
    %v137 = vpop.f32.mrf.mxu0
    %v138 = vadd.f32 %v71, %v137
    %v139 = vpop.f32.mrf.mxu0
    %v140 = vadd.f32 %v71, %v139
    %141 = vmatmul.bf16.gmra.mxu0 %v94
    %v142 = vpop.f32.mrf.mxu0
    %v143 = vadd.f32 %v71, %v142
    %v144 = vpop.f32.mrf.mxu0
    %v145 = vadd.f32 %v71, %v144
    %146 = vmatmul.bf16.gmra.mxu0 %v97
    %v147 = vpop.f32.mrf.mxu0
    %v148 = vadd.f32 %v71, %v147
    %v149 = vpop.f32.mrf.mxu0
    %v150 = vadd.f32 %v71, %v149
    %151 = vmatmul.bf16.gmra.mxu0 %v100
    %v152 = vpop.f32.mrf.mxu0
    %v153 = vadd.f32 %v71, %v152
    %v154 = vpop.f32.mrf.mxu0
    %v155 = vadd.f32 %v71, %v154
    %156 = vmatmul.bf16.gmra.mxu0 %v103
    %v157 = vpop.f32.mrf.mxu0
    %v158 = vadd.f32 %v71, %v157
    %v159 = vpop.f32.mrf.mxu0
    %v160 = vadd.f32 %v71, %v159
    %161 = vmatmul.bf16.gmra.mxu0 %v106
    %v162 = vpop.f32.mrf.mxu0
    %v163 = vadd.f32 %v71, %v162
    %v164 = vpop.f32.mrf.mxu0
    %v165 = vadd.f32 %v71, %v164
    %166 = vdwg.mxu0
    %167 = vmatpush.bf16.msra.mxu0 0
    %168 = vmatpush.bf16.msra.mxu0 0
    %169 = vmatpush.bf16.msra.mxu0 0
    %170 = vmatpush.bf16.msra.mxu0 0
    %171 = vmatpush.bf16.msra.mxu0 0
    %172 = vmatpush.bf16.msra.mxu0 0
    %173 = vmatpush.bf16.msra.mxu0 0
    %174 = vmatpush.bf16.msra.mxu0 %v116
    %175 = vmatmul.bf16.gmra.mxu0 %v85
    %v176 = vpop.f32.mrf.mxu0
    %v177 = vadd.f32 %v72, %v176
    %v178 = vpop.f32.mrf.mxu0
    %v179 = vadd.f32 %v72, %v178
    %180 = vmatmul.bf16.gmra.mxu0 %v88
    %v181 = vpop.f32.mrf.mxu0
    %v182 = vadd.f32 %v72, %v181
    %v183 = vpop.f32.mrf.mxu0
    %v184 = vadd.f32 %v72, %v183
    %185 = vmatmul.bf16.gmra.mxu0 %v91
    %v186 = vpop.f32.mrf.mxu0
    %v187 = vadd.f32 %v72, %v186
    %v188 = vpop.f32.mrf.mxu0
    %v189 = vadd.f32 %v72, %v188
    %190 = vmatmul.bf16.gmra.mxu0 %v94
    %v191 = vpop.f32.mrf.mxu0
    %v192 = vadd.f32 %v72, %v191
    %v193 = vpop.f32.mrf.mxu0
    %v194 = vadd.f32 %v72, %v193
    %195 = vmatmul.bf16.gmra.mxu0 %v97
    %v196 = vpop.f32.mrf.mxu0
    %v197 = vadd.f32 %v72, %v196
    %v198 = vpop.f32.mrf.mxu0
    %v199 = vadd.f32 %v72, %v198
    %200 = vmatmul.bf16.gmra.mxu0 %v100
    %v201 = vpop.f32.mrf.mxu0
    %v202 = vadd.f32 %v72, %v201
    %v203 = vpop.f32.mrf.mxu0
    %v204 = vadd.f32 %v72, %v203
    %205 = vmatmul.bf16.gmra.mxu0 %v103
    %v206 = vpop.f32.mrf.mxu0
    %v207 = vadd.f32 %v72, %v206
    %v208 = vpop.f32.mrf.mxu0
    %v209 = vadd.f32 %v72, %v208
    %210 = vmatmul.bf16.gmra.mxu0 %v106
    %v211 = vpop.f32.mrf.mxu0
    %v212 = vadd.f32 %v72, %v211
    %v213 = vpop.f32.mrf.mxu0
    %v214 = vadd.f32 %v72, %v213
    %215 = vdwg.mxu0
    %v216 = vmax.f32 %v128, 0.0
    %v217 = vmax.f32 %v177, 0.0
    %v218 = vmax.f32 %v130, 0.0
    %v219 = vmax.f32 %v179, 0.0
    %v220 = vmax.f32 %v133, 0.0
    %v221 = vmax.f32 %v182, 0.0
    %v222 = vmax.f32 %v135, 0.0
    %v223 = vmax.f32 %v184, 0.0
    %v224 = vmax.f32 %v138, 0.0
    %v225 = vmax.f32 %v187, 0.0
    %v226 = vmax.f32 %v140, 0.0
    %v227 = vmax.f32 %v189, 0.0
    %v228 = vmax.f32 %v143, 0.0
    %v229 = vmax.f32 %v192, 0.0
    %v230 = vmax.f32 %v145, 0.0
    %v231 = vmax.f32 %v194, 0.0
    %v232 = vmax.f32 %v148, 0.0
    %v233 = vmax.f32 %v197, 0.0
    %v234 = vmax.f32 %v150, 0.0
    %v235 = vmax.f32 %v199, 0.0
    %v236 = vmax.f32 %v153, 0.0
    %v237 = vmax.f32 %v202, 0.0
    %v238 = vmax.f32 %v155, 0.0
    %v239 = vmax.f32 %v204, 0.0
    %v240 = vmax.f32 %v158, 0.0
    %v241 = vmax.f32 %v207, 0.0
    %v242 = vmax.f32 %v160, 0.0
    %v243 = vmax.f32 %v209, 0.0
    %v244 = vmax.f32 %v163, 0.0
    %v245 = vmax.f32 %v212, 0.0
    %v246 = vmax.f32 %v165, 0.0
    %v247 = vmax.f32 %v214, 0.0
    %v248 = vpack.c.bf16 %v218, %v216
    %v249 = vpack.c.bf16 %v219, %v217
    %v250 = vpack.c.bf16 %v222, %v220
    %v251 = vpack.c.bf16 %v223, %v221
    %v252 = vpack.c.bf16 %v226, %v224
    %v253 = vpack.c.bf16 %v227, %v225
    %v254 = vpack.c.bf16 %v230, %v228
    %v255 = vpack.c.bf16 %v231, %v229
    %v256 = vpack.c.bf16 %v234, %v232
    %v257 = vpack.c.bf16 %v235, %v233
    %v258 = vpack.c.bf16 %v238, %v236
    %v259 = vpack.c.bf16 %v239, %v237
    %v260 = vpack.c.bf16 %v242, %v240
    %v261 = vpack.c.bf16 %v243, %v241
    %v262 = vpack.c.bf16 %v246, %v244
    %v263 = vpack.c.bf16 %v247, %v245
    %v264 = vld [vmem:[#allocation2] sm:$0xff]
    %v265 = vld [vmem:[#allocation2 + $0x8] sm:$0xff]
    %v266 = vld [vmem:[#allocation2 + $0x10] sm:$0xff]
    %v267 = vld [vmem:[#allocation2 + $0x18] sm:$0xff]
    %v268 = vld [vmem:[#allocation2 + $0x20] sm:$0xff]
    %v269 = vld [vmem:[#allocation2 + $0x28] sm:$0xff]
    %v270 = vld [vmem:[#allocation2 + $0x30] sm:$0xff]
    %v271 = vld [vmem:[#allocation2 + $0x38] sm:$0xff]
    %v272 = vld [vmem:[#allocation2 + $0x40] sm:$0xff]
    %v273 = vld [vmem:[#allocation2 + $0x48] sm:$0xff]
    %v274 = vld [vmem:[#allocation2 + $0x50] sm:$0xff]
    %v275 = vld [vmem:[#allocation2 + $0x58] sm:$0xff]
    %v276 = vld [vmem:[#allocation2 + $0x60] sm:$0xff]
    %v277 = vld [vmem:[#allocation2 + $0x68] sm:$0xff]
    %v278 = vld [vmem:[#allocation2 + $0x70] sm:$0xff]
    %v279 = vld [vmem:[#allocation2 + $0x78] sm:$0xff]
    %v280 = vld [vmem:[#allocation2 + $0x80] sm:$0xff]
    %v281 = vld [vmem:[#allocation2 + $0x88] sm:$0xff]
    %v282 = vld [vmem:[#allocation2 + $0x90] sm:$0xff]
    %v283 = vld [vmem:[#allocation2 + $0x98] sm:$0xff]
    %v284 = vld [vmem:[#allocation2 + $0xa0] sm:$0xff]
    %v285 = vld [vmem:[#allocation2 + $0xa8] sm:$0xff]
    %v286 = vld [vmem:[#allocation2 + $0xb0] sm:$0xff]
    %v287 = vld [vmem:[#allocation2 + $0xb8] sm:$0xff]
    %v288 = vld [vmem:[#allocation2 + $0xc0] sm:$0xff]
    %v289 = vld [vmem:[#allocation2 + $0xc8] sm:$0xff]
    %v290 = vld [vmem:[#allocation2 + $0xd0] sm:$0xff]
    %v291 = vld [vmem:[#allocation2 + $0xd8] sm:$0xff]
    %v292 = vld [vmem:[#allocation2 + $0xe0] sm:$0xff]
    %v293 = vld [vmem:[#allocation2 + $0xe8] sm:$0xff]
    %v294 = vld [vmem:[#allocation2 + $0xf0] sm:$0xff]
    %v295 = vld [vmem:[#allocation2 + $0xf8] sm:$0xff]
    %v296 = vld [vmem:[%s4] sm:$0x3]
    %v298 = vperm.slane %v296, 0
    %v299 = vperm.slane %v296, 1
    %v334 = vunpack.c.l.b16 %v264
    %v335 = vunpack.c.h.b16 %v264
    %v336 = vunpack.c.l.b16 %v265
    %v337 = vunpack.c.h.b16 %v265
    %v338 = vunpack.c.l.b16 %v266
    %v339 = vunpack.c.h.b16 %v266
    %v340 = vunpack.c.l.b16 %v267
    %v341 = vunpack.c.h.b16 %v267
    %v342 = vunpack.c.l.b16 %v268
    %v343 = vunpack.c.h.b16 %v268
    %v344 = vunpack.c.l.b16 %v269
    %v345 = vunpack.c.h.b16 %v269
    %v346 = vunpack.c.l.b16 %v270
    %v347 = vunpack.c.h.b16 %v270
    %v348 = vunpack.c.l.b16 %v271
    %v349 = vunpack.c.h.b16 %v271
    %v350 = vunpack.c.l.b16 %v272
    %v351 = vunpack.c.h.b16 %v272
    %v352 = vunpack.c.l.b16 %v273
    %v353 = vunpack.c.h.b16 %v273
    %v354 = vunpack.c.l.b16 %v274
    %v355 = vunpack.c.h.b16 %v274
    %v356 = vunpack.c.l.b16 %v275
    %v357 = vunpack.c.h.b16 %v275
    %v358 = vunpack.c.l.b16 %v276
    %v359 = vunpack.c.h.b16 %v276
    %v360 = vunpack.c.l.b16 %v277
    %v361 = vunpack.c.h.b16 %v277
    %v362 = vunpack.c.l.b16 %v278
    %v363 = vunpack.c.h.b16 %v278
    %v364 = vunpack.c.l.b16 %v279
    %v365 = vunpack.c.h.b16 %v279
    %v366 = vunpack.c.l.b16 %v280
    %v367 = vunpack.c.h.b16 %v280
    %v368 = vunpack.c.l.b16 %v281
    %v369 = vunpack.c.h.b16 %v281
    %v370 = vunpack.c.l.b16 %v282
    %v371 = vunpack.c.h.b16 %v282
    %v372 = vunpack.c.l.b16 %v283
    %v373 = vunpack.c.h.b16 %v283
    %v374 = vunpack.c.l.b16 %v284
    %v375 = vunpack.c.h.b16 %v284
    %v376 = vunpack.c.l.b16 %v285
    %v377 = vunpack.c.h.b16 %v285
    %v378 = vunpack.c.l.b16 %v286
    %v379 = vunpack.c.h.b16 %v286
    %v380 = vunpack.c.l.b16 %v287
    %v381 = vunpack.c.h.b16 %v287
    %v382 = vunpack.c.l.b16 %v288
    %v383 = vunpack.c.h.b16 %v288
    %v384 = vunpack.c.l.b16 %v289
    %v385 = vunpack.c.h.b16 %v289
    %v386 = vunpack.c.l.b16 %v290
    %v387 = vunpack.c.h.b16 %v290
    %v388 = vunpack.c.l.b16 %v291
    %v389 = vunpack.c.h.b16 %v291
    %v390 = vunpack.c.l.b16 %v292
    %v391 = vunpack.c.h.b16 %v292
    %v392 = vunpack.c.l.b16 %v293
    %v393 = vunpack.c.h.b16 %v293
    %v394 = vunpack.c.l.b16 %v294
    %v395 = vunpack.c.h.b16 %v294
    %v396 = vunpack.c.l.b16 %v295
    %v397 = vunpack.c.h.b16 %v295
    %v398 = vpack.c.b16 %v336, %v334
    %v399 = vpack.c.b16 %v337, %v335
    %v400 = vpack.c.b16 %v340, %v338
    %v401 = vpack.c.b16 %v341, %v339
    %v402 = vpack.c.b16 %v344, %v342
    %v403 = vpack.c.b16 %v345, %v343
    %v404 = vpack.c.b16 %v348, %v346
    %v405 = vpack.c.b16 %v349, %v347
    %v406 = vpack.c.b16 %v352, %v350
    %v407 = vpack.c.b16 %v353, %v351
    %v408 = vpack.c.b16 %v356, %v354
    %v409 = vpack.c.b16 %v357, %v355
    %v410 = vpack.c.b16 %v360, %v358
    %v411 = vpack.c.b16 %v361, %v359
    %v412 = vpack.c.b16 %v364, %v362
    %v413 = vpack.c.b16 %v365, %v363
    %v414 = vpack.c.b16 %v368, %v366
    %v415 = vpack.c.b16 %v369, %v367
    %v416 = vpack.c.b16 %v372, %v370
    %v417 = vpack.c.b16 %v373, %v371
    %v418 = vpack.c.b16 %v376, %v374
    %v419 = vpack.c.b16 %v377, %v375
    %v420 = vpack.c.b16 %v380, %v378
    %v421 = vpack.c.b16 %v381, %v379
    %v422 = vpack.c.b16 %v384, %v382
    %v423 = vpack.c.b16 %v385, %v383
    %v424 = vpack.c.b16 %v388, %v386
    %v425 = vpack.c.b16 %v389, %v387
    %v426 = vpack.c.b16 %v392, %v390
    %v427 = vpack.c.b16 %v393, %v391
    %v428 = vpack.c.b16 %v396, %v394
    %v429 = vpack.c.b16 %v397, %v395
    %462 = vmatpush.bf16.msra.mxu0 %v412
    %463 = vmatpush.bf16.msra.mxu0 %v410
    %464 = vmatpush.bf16.msra.mxu0 %v408
    %465 = vmatpush.bf16.msra.mxu0 %v406
    %466 = vmatpush.bf16.msra.mxu0 %v404
    %467 = vmatpush.bf16.msra.mxu0 %v402
    %468 = vmatpush.bf16.msra.mxu0 %v400
    %469 = vmatpush.bf16.msra.mxu0 %v398
    %470 = vmatmul.bf16.gmra.mxu0 %v248
    %v471 = vpop.f32.mrf.mxu0
    %v472 = vadd.f32 %v298, %v471
    %v473 = vpop.f32.mrf.mxu0
    %v474 = vadd.f32 %v298, %v473
    %475 = vmatmul.bf16.gmra.mxu0 %v250
    %v476 = vpop.f32.mrf.mxu0
    %v477 = vadd.f32 %v298, %v476
    %v478 = vpop.f32.mrf.mxu0
    %v479 = vadd.f32 %v298, %v478
    %480 = vmatmul.bf16.gmra.mxu0 %v252
    %v481 = vpop.f32.mrf.mxu0
    %v482 = vadd.f32 %v298, %v481
    %v483 = vpop.f32.mrf.mxu0
    %v484 = vadd.f32 %v298, %v483
    %485 = vmatmul.bf16.gmra.mxu0 %v254
    %v486 = vpop.f32.mrf.mxu0
    %v487 = vadd.f32 %v298, %v486
    %v488 = vpop.f32.mrf.mxu0
    %v489 = vadd.f32 %v298, %v488
    %490 = vmatmul.bf16.gmra.mxu0 %v256
    %v491 = vpop.f32.mrf.mxu0
    %v492 = vadd.f32 %v298, %v491
    %v493 = vpop.f32.mrf.mxu0
    %v494 = vadd.f32 %v298, %v493
    %495 = vmatmul.bf16.gmra.mxu0 %v258
    %v496 = vpop.f32.mrf.mxu0
    %v497 = vadd.f32 %v298, %v496
    %v498 = vpop.f32.mrf.mxu0
    %v499 = vadd.f32 %v298, %v498
    %500 = vmatmul.bf16.gmra.mxu0 %v260
    %v501 = vpop.f32.mrf.mxu0
    %v502 = vadd.f32 %v298, %v501
    %v503 = vpop.f32.mrf.mxu0
    %v504 = vadd.f32 %v298, %v503
    %505 = vmatmul.bf16.gmra.mxu0 %v262
    %v506 = vpop.f32.mrf.mxu0
    %v507 = vadd.f32 %v298, %v506
    %v508 = vpop.f32.mrf.mxu0
    %v509 = vadd.f32 %v298, %v508
    %510 = vdwg.mxu0
    %511 = vmatpush.bf16.msra.mxu0 %v428
    %512 = vmatpush.bf16.msra.mxu0 %v426
    %513 = vmatpush.bf16.msra.mxu0 %v424
    %514 = vmatpush.bf16.msra.mxu0 %v422
    %515 = vmatpush.bf16.msra.mxu0 %v420
    %516 = vmatpush.bf16.msra.mxu0 %v418
    %517 = vmatpush.bf16.msra.mxu0 %v416
    %518 = vmatpush.bf16.msra.mxu0 %v414
    %519 = vmatmul.bf16.gmra.mxu0 %v249
    %v520 = vpop.f32.mrf.mxu0
    %v521 = vadd.f32 %v472, %v520
    %v522 = vpop.f32.mrf.mxu0
    %v523 = vadd.f32 %v474, %v522
    %524 = vmatmul.bf16.gmra.mxu0 %v251
    %v525 = vpop.f32.mrf.mxu0
    %v526 = vadd.f32 %v477, %v525
    %v527 = vpop.f32.mrf.mxu0
    %v528 = vadd.f32 %v479, %v527
    %529 = vmatmul.bf16.gmra.mxu0 %v253
    %v530 = vpop.f32.mrf.mxu0
    %v531 = vadd.f32 %v482, %v530
    %v532 = vpop.f32.mrf.mxu0
    %v533 = vadd.f32 %v484, %v532
    %534 = vmatmul.bf16.gmra.mxu0 %v255
    %v535 = vpop.f32.mrf.mxu0
    %v536 = vadd.f32 %v487, %v535
    %v537 = vpop.f32.mrf.mxu0
    %v538 = vadd.f32 %v489, %v537
    %539 = vmatmul.bf16.gmra.mxu0 %v257
    %v540 = vpop.f32.mrf.mxu0
    %v541 = vadd.f32 %v492, %v540
    %v542 = vpop.f32.mrf.mxu0
    %v543 = vadd.f32 %v494, %v542
    %544 = vmatmul.bf16.gmra.mxu0 %v259
    %v545 = vpop.f32.mrf.mxu0
    %v546 = vadd.f32 %v497, %v545
    %v547 = vpop.f32.mrf.mxu0
    %v548 = vadd.f32 %v499, %v547
    %549 = vmatmul.bf16.gmra.mxu0 %v261
    %v550 = vpop.f32.mrf.mxu0
    %v551 = vadd.f32 %v502, %v550
    %v552 = vpop.f32.mrf.mxu0
    %v553 = vadd.f32 %v504, %v552
    %554 = vmatmul.bf16.gmra.mxu0 %v263
    %v555 = vpop.f32.mrf.mxu0
    %v556 = vadd.f32 %v507, %v555
    %v557 = vpop.f32.mrf.mxu0
    %v558 = vadd.f32 %v509, %v557
    %559 = vdwg.mxu0
    %560 = vmatpush.bf16.msra.mxu0 %v413
    %561 = vmatpush.bf16.msra.mxu0 %v411
    %562 = vmatpush.bf16.msra.mxu0 %v409
    %563 = vmatpush.bf16.msra.mxu0 %v407
    %564 = vmatpush.bf16.msra.mxu0 %v405
    %565 = vmatpush.bf16.msra.mxu0 %v403
    %566 = vmatpush.bf16.msra.mxu0 %v401
    %567 = vmatpush.bf16.msra.mxu0 %v399
    %568 = vmatmul.bf16.gmra.mxu0 %v248
    %v569 = vpop.f32.mrf.mxu0
    %v570 = vadd.f32 %v299, %v569
    %v571 = vpop.f32.mrf.mxu0
    %v572 = vadd.f32 %v299, %v571
    %573 = vmatmul.bf16.gmra.mxu0 %v250
    %v574 = vpop.f32.mrf.mxu0
    %v575 = vadd.f32 %v299, %v574
    %v576 = vpop.f32.mrf.mxu0
    %v577 = vadd.f32 %v299, %v576
    %578 = vmatmul.bf16.gmra.mxu0 %v252
    %v579 = vpop.f32.mrf.mxu0
    %v580 = vadd.f32 %v299, %v579
    %v581 = vpop.f32.mrf.mxu0
    %v582 = vadd.f32 %v299, %v581
    %583 = vmatmul.bf16.gmra.mxu0 %v254
    %v584 = vpop.f32.mrf.mxu0
    %v585 = vadd.f32 %v299, %v584
    %v586 = vpop.f32.mrf.mxu0
    %v587 = vadd.f32 %v299, %v586
    %588 = vmatmul.bf16.gmra.mxu0 %v256
    %v589 = vpop.f32.mrf.mxu0
    %v590 = vadd.f32 %v299, %v589
    %v591 = vpop.f32.mrf.mxu0
    %v592 = vadd.f32 %v299, %v591
    %593 = vmatmul.bf16.gmra.mxu0 %v258
    %v594 = vpop.f32.mrf.mxu0
    %v595 = vadd.f32 %v299, %v594
    %v596 = vpop.f32.mrf.mxu0
    %v597 = vadd.f32 %v299, %v596
    %598 = vmatmul.bf16.gmra.mxu0 %v260
    %v599 = vpop.f32.mrf.mxu0
    %v600 = vadd.f32 %v299, %v599
    %v601 = vpop.f32.mrf.mxu0
    %v602 = vadd.f32 %v299, %v601
    %603 = vmatmul.bf16.gmra.mxu0 %v262
    %v604 = vpop.f32.mrf.mxu0
    %v605 = vadd.f32 %v299, %v604
    %v606 = vpop.f32.mrf.mxu0
    %v607 = vadd.f32 %v299, %v606
    %608 = vdwg.mxu0
    %609 = vmatpush.bf16.msra.mxu0 %v429
    %610 = vmatpush.bf16.msra.mxu0 %v427
    %611 = vmatpush.bf16.msra.mxu0 %v425
    %612 = vmatpush.bf16.msra.mxu0 %v423
    %613 = vmatpush.bf16.msra.mxu0 %v421
    %614 = vmatpush.bf16.msra.mxu0 %v419
    %615 = vmatpush.bf16.msra.mxu0 %v417
    %616 = vmatpush.bf16.msra.mxu0 %v415
    %617 = vmatmul.bf16.gmra.mxu0 %v249
    %v618 = vpop.f32.mrf.mxu0
    %v619 = vadd.f32 %v570, %v618
    %v620 = vpop.f32.mrf.mxu0
    %v621 = vadd.f32 %v572, %v620
    %622 = vmatmul.bf16.gmra.mxu0 %v251
    %v623 = vpop.f32.mrf.mxu0
    %v624 = vadd.f32 %v575, %v623
    %v625 = vpop.f32.mrf.mxu0
    %v626 = vadd.f32 %v577, %v625
    %627 = vmatmul.bf16.gmra.mxu0 %v253
    %v628 = vpop.f32.mrf.mxu0
    %v629 = vadd.f32 %v580, %v628
    %v630 = vpop.f32.mrf.mxu0
    %v631 = vadd.f32 %v582, %v630
    %632 = vmatmul.bf16.gmra.mxu0 %v255
    %v633 = vpop.f32.mrf.mxu0
    %v634 = vadd.f32 %v585, %v633
    %v635 = vpop.f32.mrf.mxu0
    %v636 = vadd.f32 %v587, %v635
    %637 = vmatmul.bf16.gmra.mxu0 %v257
    %v638 = vpop.f32.mrf.mxu0
    %v639 = vadd.f32 %v590, %v638
    %v640 = vpop.f32.mrf.mxu0
    %v641 = vadd.f32 %v592, %v640
    %642 = vmatmul.bf16.gmra.mxu0 %v259
    %v643 = vpop.f32.mrf.mxu0
    %v644 = vadd.f32 %v595, %v643
    %v645 = vpop.f32.mrf.mxu0
    %v646 = vadd.f32 %v597, %v645
    %647 = vmatmul.bf16.gmra.mxu0 %v261
    %v648 = vpop.f32.mrf.mxu0
    %v649 = vadd.f32 %v600, %v648
    %v650 = vpop.f32.mrf.mxu0
    %v651 = vadd.f32 %v602, %v650
    %652 = vmatmul.bf16.gmra.mxu0 %v263
    %v653 = vpop.f32.mrf.mxu0
    %v654 = vadd.f32 %v605, %v653
    %v655 = vpop.f32.mrf.mxu0
    %v656 = vadd.f32 %v607, %v655
    %657 = vdwg.mxu0
    %v658 = vmax.f32 %v521, 0.0
    %v659 = vmax.f32 %v619, 0.0
    %v660 = vmax.f32 %v523, 0.0
    %v661 = vmax.f32 %v621, 0.0
    %v662 = vmax.f32 %v526, 0.0
    %v663 = vmax.f32 %v624, 0.0
    %v664 = vmax.f32 %v528, 0.0
    %v665 = vmax.f32 %v626, 0.0
    %v666 = vmax.f32 %v531, 0.0
    %v667 = vmax.f32 %v629, 0.0
    %v668 = vmax.f32 %v533, 0.0
    %v669 = vmax.f32 %v631, 0.0
    %v670 = vmax.f32 %v536, 0.0
    %v671 = vmax.f32 %v634, 0.0
    %v672 = vmax.f32 %v538, 0.0
    %v673 = vmax.f32 %v636, 0.0
    %v674 = vmax.f32 %v541, 0.0
    %v675 = vmax.f32 %v639, 0.0
    %v676 = vmax.f32 %v543, 0.0
    %v677 = vmax.f32 %v641, 0.0
    %v678 = vmax.f32 %v546, 0.0
    %v679 = vmax.f32 %v644, 0.0
    %v680 = vmax.f32 %v548, 0.0
    %v681 = vmax.f32 %v646, 0.0
    %v682 = vmax.f32 %v551, 0.0
    %v683 = vmax.f32 %v649, 0.0
    %v684 = vmax.f32 %v553, 0.0
    %v685 = vmax.f32 %v651, 0.0
    %v686 = vmax.f32 %v556, 0.0
    %v687 = vmax.f32 %v654, 0.0
    %v688 = vmax.f32 %v558, 0.0
    %v689 = vmax.f32 %v656, 0.0
    %v690 = vpack.c.bf16 %v660, %v658
    %v691 = vpack.c.bf16 %v661, %v659
    %v692 = vpack.c.bf16 %v664, %v662
    %v693 = vpack.c.bf16 %v665, %v663
    %v694 = vpack.c.bf16 %v668, %v666
    %v695 = vpack.c.bf16 %v669, %v667
    %v696 = vpack.c.bf16 %v672, %v670
    %v697 = vpack.c.bf16 %v673, %v671
    %v698 = vpack.c.bf16 %v676, %v674
    %v699 = vpack.c.bf16 %v677, %v675
    %v700 = vpack.c.bf16 %v680, %v678
    %v701 = vpack.c.bf16 %v681, %v679
    %v702 = vpack.c.bf16 %v684, %v682
    %v703 = vpack.c.bf16 %v685, %v683
    %v704 = vpack.c.bf16 %v688, %v686
    %v705 = vpack.c.bf16 %v689, %v687
    %v706 = vld [vmem:[%s5] sm:$0xff]
    %v707 = vld [vmem:[%s6] sm:$0xff]
    %709 = vset.pattern.permute.xlu0 0
    %710 = vperm.xlu0 %709, %v707
    %v711 = vpop.permute.xlu0 %710
    %v714 = vunpack.c.l.b16 %v706
    %v715 = vunpack.c.h.b16 %v706
    %v716 = vpack.c.b16 %v714, %v714
    %v717 = vpack.c.b16 %v715, %v715
    %720 = vmatpush.bf16.xpose.msra.mxu0 %v704
    %721 = vmatpush.bf16.xpose.msra.mxu0 %v702
    %722 = vmatpush.bf16.xpose.msra.mxu0 %v700
    %723 = vmatpush.bf16.xpose.msra.mxu0 %v698
    %724 = vmatpush.bf16.xpose.msra.mxu0 %v696
    %725 = vmatpush.bf16.xpose.msra.mxu0 %v694
    %726 = vmatpush.bf16.xpose.msra.mxu0 %v692
    %727 = vmatpush.bf16.xpose.msra.mxu0 %v690
    %728 = vmatmul.bf16.gmra.mxu0 %v716
    %v729 = vpop.f32.mrf.mxu0
    %v730 = vadd.f32 %v711, %v729
    %v731 = vpop.f32.mrf.mxu0
    %732 = vdwg.mxu0
    %733 = vmatpush.bf16.xpose.msra.mxu0 %v705
    %734 = vmatpush.bf16.xpose.msra.mxu0 %v703
    %735 = vmatpush.bf16.xpose.msra.mxu0 %v701
    %736 = vmatpush.bf16.xpose.msra.mxu0 %v699
    %737 = vmatpush.bf16.xpose.msra.mxu0 %v697
    %738 = vmatpush.bf16.xpose.msra.mxu0 %v695
    %739 = vmatpush.bf16.xpose.msra.mxu0 %v693
    %740 = vmatpush.bf16.xpose.msra.mxu0 %v691
    %741 = vmatmul.bf16.gmra.mxu0 %v717
    %v742 = vpop.f32.mrf.mxu0
    %v743 = vadd.f32 %v730, %v742
    %v744 = vpop.f32.mrf.mxu0
    %745 = vdwg.mxu0
    %746 = vst [vmem:[%s7] sm:$0xff] %v743
    // Predicated region
    $region34: #{linear_qnet_forward.1} parent=1 // pred_check
      _
    $region35: #{linear_qnet_forward.1} parent=1 // pred_check_branch
      %748 = sbr.rel (0) target = $region37
    $region36: #{linear_qnet_forward.1} parent=1 // pred_region
      _
    $region37: #{linear_qnet_forward.1} parent=1 // pred_fallthru
      _
    // Predicated region
    $region38: #{linear_qnet_forward.1} parent=1 // pred_check
      _
    $region39: #{linear_qnet_forward.1} parent=1 // pred_check_branch
      %750 = sbr.rel (0) target = $region41
    $region40: #{linear_qnet_forward.1} parent=1 // pred_region
      _
    $region41: #{linear_qnet_forward.1} parent=1 // pred_fallthru
      _
    %751 = vsyncpa [#allocation3], 1

</llo_original>
